<compile_context>
chip_gen: v5e
topology: v5e:2x2
jax: 0.10.0
libtpu: 0.0.40
codegen_flags: <defaults>
</compile_context>

<pallas_src>
import functools

import jax
import jax.numpy as jnp
from jax import lax
from jax.experimental import pallas as pl
from jax.experimental.pallas import tpu as pltpu


def _round_up(x: int, m: int) -> int:
    return ((x + m - 1) // m) * m


def _linear_masked_kernel(x_ref, w_ref, wm_ref, b_ref, bm_ref, o_ref, acc_ref):
    k = pl.program_id(2)

    @pl.when(k == 0)
    def _():
        acc_ref[...] = jnp.zeros_like(acc_ref)

    # Mask the weight tile on the VPU (elementwise, hidden under the MXU),
    # then contract on the MXU.
    #   x tile:             (tm, tk)
    #   masked weight tile: (tn, tk)
    # contract both on dim 1 -> (tm, tn), no transposed weight copy needed.
    w = w_ref[...] * wm_ref[...]
    acc_ref[...] += lax.dot_general(
        x_ref[...],
        w,
        dimension_numbers=(((1,), (1,)), ((), ())),
        preferred_element_type=jnp.float32,
    )

    @pl.when(k == pl.num_programs(2) - 1)
    def _():
        b = (b_ref[...] * bm_ref[...]).astype(jnp.float32)  # (1, tn) broadcast
        o_ref[...] = (acc_ref[...] + b).astype(o_ref.dtype)


@functools.partial(jax.jit, static_argnames=())
def linear_masked(x, weight, weight_mask, bias, bias_mask):
    """y = x @ (weight * weight_mask).T + bias * bias_mask"""
    M, K = x.shape
    N = weight.shape[0]

    # --- tile sizes: lane dims multiples of 128, sublane multiples of 8,
    #     clamped to the padded problem so small layers stay small ---
    tm = min(256, _round_up(M, 8))
    tn = min(512, _round_up(N, 128))
    tk = min(512, _round_up(K, 128))

    M_pad = _round_up(M, tm)
    N_pad = _round_up(N, tn)
    K_pad = _round_up(K, tk)

    # --- zero-pad to aligned shapes (zero padding is exact for a matmul) ---
    x_p = jnp.pad(x, ((0, M_pad - M), (0, K_pad - K)))
    w_p = jnp.pad(weight, ((0, N_pad - N), (0, K_pad - K)))
    wm_p = jnp.pad(weight_mask, ((0, N_pad - N), (0, K_pad - K)))
    b_p = jnp.pad(bias, (0, N_pad - N)).reshape(1, N_pad)
    bm_p = jnp.pad(bias_mask, (0, N_pad - N)).reshape(1, N_pad)

    grid = (M_pad // tm, N_pad // tn, K_pad // tk)

    flops = 2 * M_pad * N_pad * K_pad + M_pad * N_pad
    bytes_accessed = (
        x_p.size * x_p.dtype.itemsize
        + w_p.size * w_p.dtype.itemsize
        + wm_p.size * wm_p.dtype.itemsize
        + b_p.size * b_p.dtype.itemsize
        + bm_p.size * bm_p.dtype.itemsize
        + M_pad * N_pad * x.dtype.itemsize
    )

    out_padded = pl.pallas_call(
        _linear_masked_kernel,
        out_shape=jax.ShapeDtypeStruct((M_pad, N_pad), x.dtype),
        grid_spec=pltpu.PrefetchScalarGridSpec(
            num_scalar_prefetch=0,
            grid=grid,
            in_specs=[
                pl.BlockSpec((tm, tk), lambda i, j, k: (i, k)),   # x
                pl.BlockSpec((tn, tk), lambda i, j, k: (j, k)),   # weight
                pl.BlockSpec((tn, tk), lambda i, j, k: (j, k)),   # weight_mask
                pl.BlockSpec((1, tn), lambda i, j, k: (0, j)),    # bias
                pl.BlockSpec((1, tn), lambda i, j, k: (0, j)),    # bias_mask
            ],
            out_specs=pl.BlockSpec((tm, tn), lambda i, j, k: (i, j)),
            scratch_shapes=[pltpu.VMEM((tm, tn), jnp.float32)],
        ),
        compiler_params=pltpu.CompilerParams(
            dimension_semantics=("parallel", "parallel", "arbitrary"),
            vmem_limit_bytes=64 * 1024 * 1024,
        ),
        cost_estimate=pl.CostEstimate(
            flops=flops, transcendentals=0, bytes_accessed=bytes_accessed
        ),
    )(x_p, w_p, wm_p, b_p, bm_p)

    return out_padded[:M, :N]


def _reference(x, weight, weight_mask, bias, bias_mask):
    return x @ (weight * weight_mask).T + bias * bias_mask


def _run_case(key, batch, in_features, out_features):
    kx, kw, kb, kmw, kmb = jax.random.split(key, 5)
    x = jax.random.normal(kx, (batch, in_features), dtype=jnp.float32)
    weight = jax.random.normal(kw, (out_features, in_features), dtype=jnp.float32) * 0.1
    bias = jax.random.normal(kb, (out_features,), dtype=jnp.float32) * 0.1
    # Deterministic binary pruning masks.
    weight_mask = (jax.random.uniform(kmw, (out_features, in_features)) > 0.5).astype(jnp.float32)
    bias_mask = (jax.random.uniform(kmb, (out_features,)) > 0.25).astype(jnp.float32)

    y = linear_masked(x, weight, weight_mask, bias, bias_mask)
    y = jax.block_until_ready(y)

    y_ref = _reference(x, weight, weight_mask, bias, bias_mask)
    assert y.shape == (batch, out_features)
    assert jnp.allclose(y, y_ref, atol=1e-4, rtol=1e-4), "mismatch vs reference"


if __name__ == "__main__":
    key = jax.random.PRNGKey(0)
    k0, k1 = jax.random.split(key)

    # Case 1: small, non-aligned shapes (exercises the padding / slicing path).
    _run_case(k0, batch=10, in_features=200, out_features=144)
    # Case 2: aligned shapes with multiple K tiles (exercises the K reduction loop).
    _run_case(k1, batch=16, in_features=1024, out_features=256)

    print("KERNEL_OK")
</pallas_src>

<mosaic_0001>
module attributes {stable_mosaic.version = 11 : i64} {
  func.func @_linear_masked_kernel(%arg0: i32, %arg1: i32, %arg2: i32, %arg3: memref<16x256xf32, #tpu.memory_space<vmem>>, %arg4: memref<256x256xf32, #tpu.memory_space<vmem>>, %arg5: memref<256x256xf32, #tpu.memory_space<vmem>>, %arg6: memref<1x256xf32, #tpu.memory_space<vmem>>, %arg7: memref<1x256xf32, #tpu.memory_space<vmem>>, %arg8: memref<16x256xf32, #tpu.memory_space<vmem>>, %arg9: memref<16x256xf32, #tpu.memory_space<vmem>>) attributes {dimension_semantics = [#tpu.dimension_semantics<parallel>, #tpu.dimension_semantics<parallel>, #tpu.dimension_semantics<arbitrary>], iteration_bounds = array<i64: 1, 1, 1>, scalar_prefetch = 0 : i64, scratch_operands = 1 : i64, tpu.core_type = #tpu.core_type<tc>, window_params = [{transform_indices = @transform_0, window_bounds = array<i64: 16, 256>}, {transform_indices = @transform_1, window_bounds = array<i64: 256, 256>}, {transform_indices = @transform_2, window_bounds = array<i64: 256, 256>}, {transform_indices = @transform_3, window_bounds = array<i64: 1, 256>}, {transform_indices = @transform_4, window_bounds = array<i64: 1, 256>}, {transform_indices = @transform_5, window_bounds = array<i64: 16, 256>}]} {
    %c0_i32 = arith.constant 0 : i32
    %0 = arith.cmpi eq, %arg2, %c0_i32 : i32
    %1 = arith.extui %0 : i1 to i32
    %c0_i32_0 = arith.constant 0 : i32
    %2 = arith.cmpi ne, %1, %c0_i32_0 : i32
    scf.if %2 {
      %cst_12 = arith.constant 0.000000e+00 : f32
      %14 = vector.broadcast %cst_12 : f32 to vector<16x256xf32>
      %c0_13 = arith.constant 0 : index
      %c0_14 = arith.constant 0 : index
      %15 = vector.load %arg9[%c0_13, %c0_14] : memref<16x256xf32, #tpu.memory_space<vmem>>, vector<16x256xf32>
      tpu.vector_store %arg9[%c0_13, %c0_14], %14 {strides = array<i32>} : memref<16x256xf32, #tpu.memory_space<vmem>>, vector<16x256xf32>,
    } else {
    }
    %c0 = arith.constant 0 : index
    %c0_1 = arith.constant 0 : index
    %3 = vector.load %arg4[%c0, %c0_1] : memref<256x256xf32, #tpu.memory_space<vmem>>, vector<256x256xf32>
    %c0_2 = arith.constant 0 : index
    %c0_3 = arith.constant 0 : index
    %4 = vector.load %arg5[%c0_2, %c0_3] : memref<256x256xf32, #tpu.memory_space<vmem>>, vector<256x256xf32>
    %5 = arith.mulf %3, %4 : vector<256x256xf32>
    %c0_4 = arith.constant 0 : index
    %c0_5 = arith.constant 0 : index
    %6 = vector.load %arg9[%c0_4, %c0_5] : memref<16x256xf32, #tpu.memory_space<vmem>>, vector<16x256xf32>
    %c0_6 = arith.constant 0 : index
    %c0_7 = arith.constant 0 : index
    %7 = vector.load %arg3[%c0_6, %c0_7] : memref<16x256xf32, #tpu.memory_space<vmem>>, vector<16x256xf32>
    %cst = arith.constant dense<0.000000e+00> : vector<16x256xf32>
    %8 = tpu.matmul %7, %5, %cst {dimension_numbers = #tpu.dot_dimension_numbers<[1], [1], [0], [0], [0, 0, 1, 0], [], []>} : vector<16x256xf32>, vector<256x256xf32>, vector<16x256xf32> -> vector<16x256xf32>
    %9 = arith.addf %6, %8 : vector<16x256xf32>
    %c0_8 = arith.constant 0 : index
    %c0_9 = arith.constant 0 : index
    %10 = vector.load %arg9[%c0_8, %c0_9] : memref<16x256xf32, #tpu.memory_space<vmem>>, vector<16x256xf32>
    tpu.vector_store %arg9[%c0_8, %c0_9], %9 {strides = array<i32>} : memref<16x256xf32, #tpu.memory_space<vmem>>, vector<16x256xf32>,
    %c0_i32_10 = arith.constant 0 : i32
    %11 = arith.cmpi eq, %arg2, %c0_i32_10 : i32
    %12 = arith.extui %11 : i1 to i32
    %c0_i32_11 = arith.constant 0 : i32
    %13 = arith.cmpi ne, %12, %c0_i32_11 : i32
    scf.if %13 {
      %c0_12 = arith.constant 0 : index
      %c0_13 = arith.constant 0 : index
      %14 = vector.load %arg6[%c0_12, %c0_13] : memref<1x256xf32, #tpu.memory_space<vmem>>, vector<1x256xf32>
      %c0_14 = arith.constant 0 : index
      %c0_15 = arith.constant 0 : index
      %15 = vector.load %arg7[%c0_14, %c0_15] : memref<1x256xf32, #tpu.memory_space<vmem>>, vector<1x256xf32>
      %16 = arith.mulf %14, %15 : vector<1x256xf32>
      %c0_16 = arith.constant 0 : index
      %c0_17 = arith.constant 0 : index
      %17 = vector.load %arg9[%c0_16, %c0_17] : memref<16x256xf32, #tpu.memory_space<vmem>>, vector<16x256xf32>
      %18 = vector.broadcast %16 : vector<1x256xf32> to vector<16x256xf32>
      %19 = arith.addf %17, %18 : vector<16x256xf32>
      %c0_18 = arith.constant 0 : index
      %c0_19 = arith.constant 0 : index
      %20 = vector.load %arg8[%c0_18, %c0_19] : memref<16x256xf32, #tpu.memory_space<vmem>>, vector<16x256xf32>
      tpu.vector_store %arg8[%c0_18, %c0_19], %19 {strides = array<i32>} : memref<16x256xf32, #tpu.memory_space<vmem>>, vector<16x256xf32>,
    } else {
    }
    return
  }
  func.func @transform_0(%arg0: i32, %arg1: i32, %arg2: i32) -> (i32, i32) {
    %c0_i32 = arith.constant 0 : i32
    return %arg0, %arg2 : i32, i32
  }
  func.func @transform_1(%arg0: i32, %arg1: i32, %arg2: i32) -> (i32, i32) {
    %c0_i32 = arith.constant 0 : i32
    return %arg1, %arg2 : i32, i32
  }
  func.func @transform_2(%arg0: i32, %arg1: i32, %arg2: i32) -> (i32, i32) {
    %c0_i32 = arith.constant 0 : i32
    return %arg1, %arg2 : i32, i32
  }
  func.func @transform_3(%arg0: i32, %arg1: i32, %arg2: i32) -> (i32, i32) {
    %c0_i32 = arith.constant 0 : i32
    %c0_i32_0 = arith.constant 0 : i32
    return %c0_i32, %arg1 : i32, i32
  }
  func.func @transform_4(%arg0: i32, %arg1: i32, %arg2: i32) -> (i32, i32) {
    %c0_i32 = arith.constant 0 : i32
    %c0_i32_0 = arith.constant 0 : i32
    return %c0_i32, %arg1 : i32, i32
  }
  func.func @transform_5(%arg0: i32, %arg1: i32, %arg2: i32) -> (i32, i32) {
    %c0_i32 = arith.constant 0 : i32
    return %arg0, %arg1 : i32, i32
  }
}

</mosaic_0001>

<llo_original>
// kernel: linear_masked.1
$region0: #{linear_masked.1}
  #allocation0 [shape = 'u32[]', space=smem, size = 0x4, offset = 0x4, fixed_abs, tag = 'smem constant byte address 0x4 - core index']
  #allocation1 [shape = 'u32[72,128]{1,0:T(1,128)}', space=vmem, size = 0x9000, scoped, tag = 'internal scratch']
  #allocation2 [shape = 'f32[16,256]{1,0:T(8,128)}', space=vmem, size = 0x4000, scoped, tag = 'scratch operand']
  %s0 = inlined_call_operand.vmem [shape: f32[16,256], index: 0, kind: input, shape index: {}]
  %s1 = inlined_call_operand.vmem [shape: f32[256,256], index: 1, kind: input, shape index: {}]
  %s2 = inlined_call_operand.vmem [shape: f32[256,256], index: 2, kind: input, shape index: {}]
  %s3 = inlined_call_operand.vmem [shape: f32[1,256], index: 3, kind: input, shape index: {}]
  %s4 = inlined_call_operand.vmem [shape: f32[1,256], index: 4, kind: input, shape index: {}]
  %s5 = inlined_call_operand.hbm [shape: f32[16,256], index: 5, kind: output, shape index: {}]
  %s6 = sld [smem:[#allocation0]]
  $region38: #{linear_masked.1} parent=0
    _
  %s8 = ssub.s32 1, %s6
  %s9 = scalar_select 0, %s8, %s6
  $region1: #{linear_masked.1} parent=0
    #allocation3 [shape = 'u8[16384]{0}', space=vmem, size = 0x4000, scoped, tag = 'output window, operand 0, single buffered']
    #allocation4 [shape = 's32[1]{0}', space=sflag, size = 0x4, scoped, tag = 'scoped memory for linear_masked.1']
    %10 = vsyncpa [#allocation4], 0
    // Predicated region
    $region2: #{linear_masked.1} parent=1 // pred_check
      _
    $region3: #{linear_masked.1} parent=1 // pred_check_branch
      %12 = sbr.rel (0) target = $region5
    $region4: #{linear_masked.1} parent=1 // pred_region
      _
    $region5: #{linear_masked.1} parent=1 // pred_fallthru
      _
    // Predicated region
    $region6: #{linear_masked.1} parent=1 // pred_check
      _
    $region7: #{linear_masked.1} parent=1 // pred_check_branch
      %14 = sbr.rel (0) target = $region9
    $region8: #{linear_masked.1} parent=1 // pred_region
      _
    $region9: #{linear_masked.1} parent=1 // pred_fallthru
      _
    // Predicated region
    $region10: #{linear_masked.1} parent=1 // pred_check
      _
    $region11: #{linear_masked.1} parent=1 // pred_check_branch
      %16 = sbr.rel (0) target = $region13
    $region12: #{linear_masked.1} parent=1 // pred_region
      _
    $region13: #{linear_masked.1} parent=1 // pred_fallthru
      _
    // Predicated region
    $region14: #{linear_masked.1} parent=1 // pred_check
      _
    $region15: #{linear_masked.1} parent=1 // pred_check_branch
      %18 = sbr.rel (0) target = $region17
    $region16: #{linear_masked.1} parent=1 // pred_region
      _
    $region17: #{linear_masked.1} parent=1 // pred_fallthru
      _
    // Predicated region
    $region18: #{linear_masked.1} parent=1 // pred_check
      _
    $region19: #{linear_masked.1} parent=1 // pred_check_branch
      %20 = sbr.rel (0) target = $region21
    $region20: #{linear_masked.1} parent=1 // pred_region
      _
    $region21: #{linear_masked.1} parent=1 // pred_fallthru
      _
    %p21 = scmp.eq.s32.totalorder 0, 0
    // Predicated region
    $region22: #{linear_masked.1} parent=1 // pred_check
      %p22 = pneg %p21
    $region23: #{linear_masked.1} parent=1 // pred_check_branch
      %24 = sbr.rel (%p22) target = $region25
    $region24: #{linear_masked.1} parent=1 // pred_region
      %25 = vst [vmem:[#allocation2] sm:$0xff] 0.0
      %26 = vst [vmem:[#allocation2 + $0x8] sm:$0xff] 0.0
      %27 = vst [vmem:[#allocation2 + $0x10] sm:$0xff] 0.0
      %28 = vst [vmem:[#allocation2 + $0x18] sm:$0xff] 0.0
    $region25: #{linear_masked.1} parent=1 // pred_fallthru
      _
    %v29 = vld [vmem:[%s1] sm:$0xff]
    %v30 = vld [vmem:[%s1 + $0x8] sm:$0xff]
    %v31 = vld [vmem:[%s1 + $0x10] sm:$0xff]
    %v32 = vld [vmem:[%s1 + $0x18] sm:$0xff]
    %v33 = vld [vmem:[%s1 + $0x20] sm:$0xff]
    %v34 = vld [vmem:[%s1 + $0x28] sm:$0xff]
    %v35 = vld [vmem:[%s1 + $0x30] sm:$0xff]
    %v36 = vld [vmem:[%s1 + $0x38] sm:$0xff]
    %v37 = vld [vmem:[%s1 + $0x40] sm:$0xff]
    %v38 = vld [vmem:[%s1 + $0x48] sm:$0xff]
    %v39 = vld [vmem:[%s1 + $0x50] sm:$0xff]
    %v40 = vld [vmem:[%s1 + $0x58] sm:$0xff]
    %v41 = vld [vmem:[%s1 + $0x60] sm:$0xff]
    %v42 = vld [vmem:[%s1 + $0x68] sm:$0xff]
    %v43 = vld [vmem:[%s1 + $0x70] sm:$0xff]
    %v44 = vld [vmem:[%s1 + $0x78] sm:$0xff]
    %v45 = vld [vmem:[%s1 + $0x80] sm:$0xff]
    %v46 = vld [vmem:[%s1 + $0x88] sm:$0xff]
    %v47 = vld [vmem:[%s1 + $0x90] sm:$0xff]
    %v48 = vld [vmem:[%s1 + $0x98] sm:$0xff]
    %v49 = vld [vmem:[%s1 + $0xa0] sm:$0xff]
    %v50 = vld [vmem:[%s1 + $0xa8] sm:$0xff]
    %v51 = vld [vmem:[%s1 + $0xb0] sm:$0xff]
    %v52 = vld [vmem:[%s1 + $0xb8] sm:$0xff]
    %v53 = vld [vmem:[%s1 + $0xc0] sm:$0xff]
    %v54 = vld [vmem:[%s1 + $0xc8] sm:$0xff]
    %v55 = vld [vmem:[%s1 + $0xd0] sm:$0xff]
    %v56 = vld [vmem:[%s1 + $0xd8] sm:$0xff]
    %v57 = vld [vmem:[%s1 + $0xe0] sm:$0xff]
    %v58 = vld [vmem:[%s1 + $0xe8] sm:$0xff]
    %v59 = vld [vmem:[%s1 + $0xf0] sm:$0xff]
    %v60 = vld [vmem:[%s1 + $0xf8] sm:$0xff]
    %v61 = vld [vmem:[%s1 + $0x100] sm:$0xff]
    %v62 = vld [vmem:[%s1 + $0x108] sm:$0xff]
    %v63 = vld [vmem:[%s1 + $0x110] sm:$0xff]
    %v64 = vld [vmem:[%s1 + $0x118] sm:$0xff]
    %v65 = vld [vmem:[%s1 + $0x120] sm:$0xff]
    %v66 = vld [vmem:[%s1 + $0x128] sm:$0xff]
    %v67 = vld [vmem:[%s1 + $0x130] sm:$0xff]
    %v68 = vld [vmem:[%s1 + $0x138] sm:$0xff]
    %v69 = vld [vmem:[%s1 + $0x140] sm:$0xff]
    %v70 = vld [vmem:[%s1 + $0x148] sm:$0xff]
    %v71 = vld [vmem:[%s1 + $0x150] sm:$0xff]
    %v72 = vld [vmem:[%s1 + $0x158] sm:$0xff]
    %v73 = vld [vmem:[%s1 + $0x160] sm:$0xff]
    %v74 = vld [vmem:[%s1 + $0x168] sm:$0xff]
    %v75 = vld [vmem:[%s1 + $0x170] sm:$0xff]
    %v76 = vld [vmem:[%s1 + $0x178] sm:$0xff]
    %v77 = vld [vmem:[%s1 + $0x180] sm:$0xff]
    %v78 = vld [vmem:[%s1 + $0x188] sm:$0xff]
    %v79 = vld [vmem:[%s1 + $0x190] sm:$0xff]
    %v80 = vld [vmem:[%s1 + $0x198] sm:$0xff]
    %v81 = vld [vmem:[%s1 + $0x1a0] sm:$0xff]
    %v82 = vld [vmem:[%s1 + $0x1a8] sm:$0xff]
    %v83 = vld [vmem:[%s1 + $0x1b0] sm:$0xff]
    %v84 = vld [vmem:[%s1 + $0x1b8] sm:$0xff]
    %v85 = vld [vmem:[%s1 + $0x1c0] sm:$0xff]
    %v86 = vld [vmem:[%s1 + $0x1c8] sm:$0xff]
    %v87 = vld [vmem:[%s1 + $0x1d0] sm:$0xff]
    %v88 = vld [vmem:[%s1 + $0x1d8] sm:$0xff]
    %v89 = vld [vmem:[%s1 + $0x1e0] sm:$0xff]
    %v90 = vld [vmem:[%s1 + $0x1e8] sm:$0xff]
    %v91 = vld [vmem:[%s1 + $0x1f0] sm:$0xff]
    %v92 = vld [vmem:[%s1 + $0x1f8] sm:$0xff]
    %v93 = vld [vmem:[%s2] sm:$0xff]
    %v94 = vld [vmem:[%s2 + $0x8] sm:$0xff]
    %v95 = vld [vmem:[%s2 + $0x10] sm:$0xff]
    %v96 = vld [vmem:[%s2 + $0x18] sm:$0xff]
    %v97 = vld [vmem:[%s2 + $0x20] sm:$0xff]
    %v98 = vld [vmem:[%s2 + $0x28] sm:$0xff]
    %v99 = vld [vmem:[%s2 + $0x30] sm:$0xff]
    %v100 = vld [vmem:[%s2 + $0x38] sm:$0xff]
    %v101 = vld [vmem:[%s2 + $0x40] sm:$0xff]
    %v102 = vld [vmem:[%s2 + $0x48] sm:$0xff]
    %v103 = vld [vmem:[%s2 + $0x50] sm:$0xff]
    %v104 = vld [vmem:[%s2 + $0x58] sm:$0xff]
    %v105 = vld [vmem:[%s2 + $0x60] sm:$0xff]
    %v106 = vld [vmem:[%s2 + $0x68] sm:$0xff]
    %v107 = vld [vmem:[%s2 + $0x70] sm:$0xff]
    %v108 = vld [vmem:[%s2 + $0x78] sm:$0xff]
    %v109 = vld [vmem:[%s2 + $0x80] sm:$0xff]
    %v110 = vld [vmem:[%s2 + $0x88] sm:$0xff]
    %v111 = vld [vmem:[%s2 + $0x90] sm:$0xff]
    %v112 = vld [vmem:[%s2 + $0x98] sm:$0xff]
    %v113 = vld [vmem:[%s2 + $0xa0] sm:$0xff]
    %v114 = vld [vmem:[%s2 + $0xa8] sm:$0xff]
    %v115 = vld [vmem:[%s2 + $0xb0] sm:$0xff]
    %v116 = vld [vmem:[%s2 + $0xb8] sm:$0xff]
    %v117 = vld [vmem:[%s2 + $0xc0] sm:$0xff]
    %v118 = vld [vmem:[%s2 + $0xc8] sm:$0xff]
    %v119 = vld [vmem:[%s2 + $0xd0] sm:$0xff]
    %v120 = vld [vmem:[%s2 + $0xd8] sm:$0xff]
    %v121 = vld [vmem:[%s2 + $0xe0] sm:$0xff]
    %v122 = vld [vmem:[%s2 + $0xe8] sm:$0xff]
    %v123 = vld [vmem:[%s2 + $0xf0] sm:$0xff]
    %v124 = vld [vmem:[%s2 + $0xf8] sm:$0xff]
    %v125 = vld [vmem:[%s2 + $0x100] sm:$0xff]
    %v126 = vld [vmem:[%s2 + $0x108] sm:$0xff]
    %v127 = vld [vmem:[%s2 + $0x110] sm:$0xff]
    %v128 = vld [vmem:[%s2 + $0x118] sm:$0xff]
    %v129 = vld [vmem:[%s2 + $0x120] sm:$0xff]
    %v130 = vld [vmem:[%s2 + $0x128] sm:$0xff]
    %v131 = vld [vmem:[%s2 + $0x130] sm:$0xff]
    %v132 = vld [vmem:[%s2 + $0x138] sm:$0xff]
    %v133 = vld [vmem:[%s2 + $0x140] sm:$0xff]
    %v134 = vld [vmem:[%s2 + $0x148] sm:$0xff]
    %v135 = vld [vmem:[%s2 + $0x150] sm:$0xff]
    %v136 = vld [vmem:[%s2 + $0x158] sm:$0xff]
    %v137 = vld [vmem:[%s2 + $0x160] sm:$0xff]
    %v138 = vld [vmem:[%s2 + $0x168] sm:$0xff]
    %v139 = vld [vmem:[%s2 + $0x170] sm:$0xff]
    %v140 = vld [vmem:[%s2 + $0x178] sm:$0xff]
    %v141 = vld [vmem:[%s2 + $0x180] sm:$0xff]
    %v142 = vld [vmem:[%s2 + $0x188] sm:$0xff]
    %v143 = vld [vmem:[%s2 + $0x190] sm:$0xff]
    %v144 = vld [vmem:[%s2 + $0x198] sm:$0xff]
    %v145 = vld [vmem:[%s2 + $0x1a0] sm:$0xff]
    %v146 = vld [vmem:[%s2 + $0x1a8] sm:$0xff]
    %v147 = vld [vmem:[%s2 + $0x1b0] sm:$0xff]
    %v148 = vld [vmem:[%s2 + $0x1b8] sm:$0xff]
    %v149 = vld [vmem:[%s2 + $0x1c0] sm:$0xff]
    %v150 = vld [vmem:[%s2 + $0x1c8] sm:$0xff]
    %v151 = vld [vmem:[%s2 + $0x1d0] sm:$0xff]
    %v152 = vld [vmem:[%s2 + $0x1d8] sm:$0xff]
    %v153 = vld [vmem:[%s2 + $0x1e0] sm:$0xff]
    %v154 = vld [vmem:[%s2 + $0x1e8] sm:$0xff]
    %v155 = vld [vmem:[%s2 + $0x1f0] sm:$0xff]
    %v156 = vld [vmem:[%s2 + $0x1f8] sm:$0xff]
    %v157 = vmul.f32 %v29, %v93
    %v158 = vmul.f32 %v30, %v94
    %v159 = vmul.f32 %v31, %v95
    %v160 = vmul.f32 %v32, %v96
    %v161 = vmul.f32 %v33, %v97
    %v162 = vmul.f32 %v34, %v98
    %v163 = vmul.f32 %v35, %v99
    %v164 = vmul.f32 %v36, %v100
    %v165 = vmul.f32 %v37, %v101
    %v166 = vmul.f32 %v38, %v102
    %v167 = vmul.f32 %v39, %v103
    %v168 = vmul.f32 %v40, %v104
    %v169 = vmul.f32 %v41, %v105
    %v170 = vmul.f32 %v42, %v106
    %v171 = vmul.f32 %v43, %v107
    %v172 = vmul.f32 %v44, %v108
    %v173 = vmul.f32 %v45, %v109
    %v174 = vmul.f32 %v46, %v110
    %v175 = vmul.f32 %v47, %v111
    %v176 = vmul.f32 %v48, %v112
    %v177 = vmul.f32 %v49, %v113
    %v178 = vmul.f32 %v50, %v114
    %v179 = vmul.f32 %v51, %v115
    %v180 = vmul.f32 %v52, %v116
    %v181 = vmul.f32 %v53, %v117
    %v182 = vmul.f32 %v54, %v118
    %v183 = vmul.f32 %v55, %v119
    %v184 = vmul.f32 %v56, %v120
    %v185 = vmul.f32 %v57, %v121
    %v186 = vmul.f32 %v58, %v122
    %v187 = vmul.f32 %v59, %v123
    %v188 = vmul.f32 %v60, %v124
    %v189 = vmul.f32 %v61, %v125
    %v190 = vmul.f32 %v62, %v126
    %v191 = vmul.f32 %v63, %v127
    %v192 = vmul.f32 %v64, %v128
    %v193 = vmul.f32 %v65, %v129
    %v194 = vmul.f32 %v66, %v130
    %v195 = vmul.f32 %v67, %v131
    %v196 = vmul.f32 %v68, %v132
    %v197 = vmul.f32 %v69, %v133
    %v198 = vmul.f32 %v70, %v134
    %v199 = vmul.f32 %v71, %v135
    %v200 = vmul.f32 %v72, %v136
    %v201 = vmul.f32 %v73, %v137
    %v202 = vmul.f32 %v74, %v138
    %v203 = vmul.f32 %v75, %v139
    %v204 = vmul.f32 %v76, %v140
    %v205 = vmul.f32 %v77, %v141
    %v206 = vmul.f32 %v78, %v142
    %v207 = vmul.f32 %v79, %v143
    %v208 = vmul.f32 %v80, %v144
    %v209 = vmul.f32 %v81, %v145
    %v210 = vmul.f32 %v82, %v146
    %v211 = vmul.f32 %v83, %v147
    %v212 = vmul.f32 %v84, %v148
    %v213 = vmul.f32 %v85, %v149
    %v214 = vmul.f32 %v86, %v150
    %v215 = vmul.f32 %v87, %v151
    %v216 = vmul.f32 %v88, %v152
    %v217 = vmul.f32 %v89, %v153
    %v218 = vmul.f32 %v90, %v154
    %v219 = vmul.f32 %v91, %v155
    %v220 = vmul.f32 %v92, %v156
    %v221 = vld [vmem:[#allocation2] sm:$0xff]
    %v222 = vld [vmem:[#allocation2 + $0x8] sm:$0xff]
    %v223 = vld [vmem:[#allocation2 + $0x10] sm:$0xff]
    %v224 = vld [vmem:[#allocation2 + $0x18] sm:$0xff]
    %v225 = vld [vmem:[%s0] sm:$0xff]
    %v226 = vld [vmem:[%s0 + $0x8] sm:$0xff]
    %v227 = vld [vmem:[%s0 + $0x10] sm:$0xff]
    %v228 = vld [vmem:[%s0 + $0x18] sm:$0xff]
    %229 = vmatpush.xpose.msra.mxu0 %v187
    %230 = vmatpush.xpose.msra.mxu0 %v185
    %231 = vmatpush.xpose.msra.mxu0 %v183
    %232 = vmatpush.xpose.msra.mxu0 %v181
    %233 = vmatpush.xpose.msra.mxu0 %v179
    %234 = vmatpush.xpose.msra.mxu0 %v177
    %235 = vmatpush.xpose.msra.mxu0 %v175
    %236 = vmatpush.xpose.msra.mxu0 %v173
    %237 = vmatpush.xpose.msra.mxu0 %v171
    %238 = vmatpush.xpose.msra.mxu0 %v169
    %239 = vmatpush.xpose.msra.mxu0 %v167
    %240 = vmatpush.xpose.msra.mxu0 %v165
    %241 = vmatpush.xpose.msra.mxu0 %v163
    %242 = vmatpush.xpose.msra.mxu0 %v161
    %243 = vmatpush.xpose.msra.mxu0 %v159
    %244 = vmatpush.xpose.msra.mxu0 %v157
    %245 = vmatmul.f32.gmra.mxu0 %v225
    %v246 = vpop.f32.mrf.mxu0
    %v247 = vadd.f32 0.0, %v246
    %248 = vmatmul.f32.gmra.mxu0 %v227
    %v249 = vpop.f32.mrf.mxu0
    %v250 = vadd.f32 0.0, %v249
    %251 = vdwg.mxu0
    %252 = vmatpush.xpose.msra.mxu0 %v188
    %253 = vmatpush.xpose.msra.mxu0 %v186
    %254 = vmatpush.xpose.msra.mxu0 %v184
    %255 = vmatpush.xpose.msra.mxu0 %v182
    %256 = vmatpush.xpose.msra.mxu0 %v180
    %257 = vmatpush.xpose.msra.mxu0 %v178
    %258 = vmatpush.xpose.msra.mxu0 %v176
    %259 = vmatpush.xpose.msra.mxu0 %v174
    %260 = vmatpush.xpose.msra.mxu0 %v172
    %261 = vmatpush.xpose.msra.mxu0 %v170
    %262 = vmatpush.xpose.msra.mxu0 %v168
    %263 = vmatpush.xpose.msra.mxu0 %v166
    %264 = vmatpush.xpose.msra.mxu0 %v164
    %265 = vmatpush.xpose.msra.mxu0 %v162
    %266 = vmatpush.xpose.msra.mxu0 %v160
    %267 = vmatpush.xpose.msra.mxu0 %v158
    %268 = vmatmul.f32.gmra.mxu0 %v226
    %v269 = vpop.f32.mrf.mxu0
    %v270 = vadd.f32 %v247, %v269
    %271 = vmatmul.f32.gmra.mxu0 %v228
    %v272 = vpop.f32.mrf.mxu0
    %v273 = vadd.f32 %v250, %v272
    %274 = vdwg.mxu0
    %275 = vmatpush.xpose.msra.mxu0 %v219
    %276 = vmatpush.xpose.msra.mxu0 %v217
    %277 = vmatpush.xpose.msra.mxu0 %v215
    %278 = vmatpush.xpose.msra.mxu0 %v213
    %279 = vmatpush.xpose.msra.mxu0 %v211
    %280 = vmatpush.xpose.msra.mxu0 %v209
    %281 = vmatpush.xpose.msra.mxu0 %v207
    %282 = vmatpush.xpose.msra.mxu0 %v205
    %283 = vmatpush.xpose.msra.mxu0 %v203
    %284 = vmatpush.xpose.msra.mxu0 %v201
    %285 = vmatpush.xpose.msra.mxu0 %v199
    %286 = vmatpush.xpose.msra.mxu0 %v197
    %287 = vmatpush.xpose.msra.mxu0 %v195
    %288 = vmatpush.xpose.msra.mxu0 %v193
    %289 = vmatpush.xpose.msra.mxu0 %v191
    %290 = vmatpush.xpose.msra.mxu0 %v189
    %291 = vmatmul.f32.gmra.mxu0 %v225
    %v292 = vpop.f32.mrf.mxu0
    %v293 = vadd.f32 0.0, %v292
    %294 = vmatmul.f32.gmra.mxu0 %v227
    %v295 = vpop.f32.mrf.mxu0
    %v296 = vadd.f32 0.0, %v295
    %297 = vdwg.mxu0
    %298 = vmatpush.xpose.msra.mxu0 %v220
    %299 = vmatpush.xpose.msra.mxu0 %v218
    %300 = vmatpush.xpose.msra.mxu0 %v216
    %301 = vmatpush.xpose.msra.mxu0 %v214
    %302 = vmatpush.xpose.msra.mxu0 %v212
    %303 = vmatpush.xpose.msra.mxu0 %v210
    %304 = vmatpush.xpose.msra.mxu0 %v208
    %305 = vmatpush.xpose.msra.mxu0 %v206
    %306 = vmatpush.xpose.msra.mxu0 %v204
    %307 = vmatpush.xpose.msra.mxu0 %v202
    %308 = vmatpush.xpose.msra.mxu0 %v200
    %309 = vmatpush.xpose.msra.mxu0 %v198
    %310 = vmatpush.xpose.msra.mxu0 %v196
    %311 = vmatpush.xpose.msra.mxu0 %v194
    %312 = vmatpush.xpose.msra.mxu0 %v192
    %313 = vmatpush.xpose.msra.mxu0 %v190
    %314 = vmatmul.f32.gmra.mxu0 %v226
    %v315 = vpop.f32.mrf.mxu0
    %v316 = vadd.f32 %v293, %v315
    %317 = vmatmul.f32.gmra.mxu0 %v228
    %v318 = vpop.f32.mrf.mxu0
    %v319 = vadd.f32 %v296, %v318
    %320 = vdwg.mxu0
    %v321 = vadd.f32 %v221, %v270
    %v322 = vadd.f32 %v222, %v316
    %v323 = vadd.f32 %v223, %v273
    %v324 = vadd.f32 %v224, %v319
    %325 = vst [vmem:[#allocation2] sm:$0xff] %v321
    %326 = vst [vmem:[#allocation2 + $0x8] sm:$0xff] %v322
    %327 = vst [vmem:[#allocation2 + $0x10] sm:$0xff] %v323
    %328 = vst [vmem:[#allocation2 + $0x18] sm:$0xff] %v324
    // Predicated region
    $region26: #{linear_masked.1} parent=1 // pred_check
      %p329 = pneg %p21
    $region27: #{linear_masked.1} parent=1 // pred_check_branch
      %331 = sbr.rel (%p329) target = $region29
    $region28: #{linear_masked.1} parent=1 // pred_region
      %v332 = vld [vmem:[%s3] sm:$0x3]
      %v333 = vld [vmem:[%s4] sm:$0x3]
      %v334 = vmul.f32 %v332, %v333
      %v335 = vld [vmem:[#allocation2] sm:$0xff]
      %v336 = vld [vmem:[#allocation2 + $0x8] sm:$0xff]
      %v337 = vld [vmem:[#allocation2 + $0x10] sm:$0xff]
      %v338 = vld [vmem:[#allocation2 + $0x18] sm:$0xff]
      %v340 = vperm.slane %v334, 0
      %v341 = vperm.slane %v334, 1
      %v344 = vadd.f32 %v335, %v340
      %v345 = vadd.f32 %v336, %v341
      %v346 = vadd.f32 %v337, %v340
      %v347 = vadd.f32 %v338, %v341
      %348 = vst [vmem:[#allocation3] sm:$0xff] %v344
      %349 = vst [vmem:[#allocation3 + $0x8] sm:$0xff] %v345
      %350 = vst [vmem:[#allocation3 + $0x10] sm:$0xff] %v346
      %351 = vst [vmem:[#allocation3 + $0x18] sm:$0xff] %v347
    $region29: #{linear_masked.1} parent=1 // pred_fallthru
      _
    // Predicated region
    $region30: #{linear_masked.1} parent=1 // pred_check
      _
    $region31: #{linear_masked.1} parent=1 // pred_check_branch
      %353 = sbr.rel (0) target = $region33
    $region32: #{linear_masked.1} parent=1 // pred_region
      %355 = vsyncadd [#allocation4], 0
      %s356 = sshll.u32 [#allocation3], 4
      %s357 = int_to_ptr.vmem [resolvable:$true] %s356
      %s358 = sshll.u32 %s5, 4
      %s359 = int_to_ptr.hbm [resolvable:$true] %s358
      %364 = dma.vmem_to_hbm [thread:$0]  %s357, 512, %s359, [#allocation4], 256, 256, 16
    $region33: #{linear_masked.1} parent=1 // pred_fallthru
      _
    // Predicated region
    $region34: #{linear_masked.1} parent=1 // pred_check
      _
    $region35: #{linear_masked.1} parent=1 // pred_check_branch
      %366 = sbr.rel (0) target = $region37
    $region36: #{linear_masked.1} parent=1 // pred_region
      %368 = dma.done [#allocation4], 512
    $region37: #{linear_masked.1} parent=1 // pred_fallthru
      _
    %369 = vsyncpa [#allocation4], 1

</llo_original>
